<compile_context>
chip_gen: v5e
topology: v5e:2x2
jax: 0.10.0
libtpu: 0.0.40
codegen_flags: <defaults>
</compile_context>

<pallas_src>
import jax
import jax.numpy as jnp
from jax.experimental import pallas as pl
from jax.experimental.pallas import tpu as pltpu


def bank_nodes_kernel(x_ref, w1_ref, b1_ref, w2_ref, b2_ref, o_ref):
    # fc1 + ReLU.  Cast the (VMEM-resident) x tile to the weight dtype so the
    # MXU sees a homogeneous bf16 (or f32) matmul; accumulate in f32.
    x = x_ref[...].astype(w1_ref.dtype)
    h = jnp.dot(x, w1_ref[...], preferred_element_type=jnp.float32)
    h = jnp.maximum(h + b1_ref[...], 0.0)            # b1 is (1, hidden), broadcasts
    # fc2 + Hardsigmoid: relu6(y + 3) / 6 == clip(y * (1/6) + 0.5, 0, 1).
    # Cast h down to w2's dtype so the bf16 MXU path is taken on v6e/v7x.
    y = jnp.dot(h.astype(w2_ref.dtype), w2_ref[...],
                preferred_element_type=jnp.float32)
    y = y + b2_ref[...]                               # b2 is (1, out), broadcasts
    y = jnp.clip(y * (1.0 / 6.0) + 0.5, 0.0, 1.0)
    o_ref[...] = y.astype(o_ref.dtype)


def _round_up(x, m):
    return ((x + m - 1) // m) * m


def _choose_tile_b(batch, requested):
    """Pick a batch tile: big (amortize per-step overhead) but keeping >=2
    grid steps when batch allows so v7x's two TensorCores both get work."""
    if batch > requested:
        return requested                      # plenty of steps already
    if batch >= 16:
        return _round_up(pl.cdiv(batch, 2), 8)  # split in two, 8-aligned
    return batch                               # tiny: one full-batch block


def bank_nodes_forward_batched(x, w1, b1, w2, b2, tile_b=512, compute_dtype=None):
    """BankNodes forward over a batch of rows.

    x:  (batch, input_size) f32
    w1: (input_size, hidden)   w2: (hidden, output_size)   [i.e. nn.Linear W.T]
    b1: (hidden,) or (1, hidden)   b2: (output_size,) or (1, output_size)

    compute_dtype: optionally a dtype (e.g. jnp.bfloat16 on v6e/v7x) for the
    persistent weights only; x is never cast in the wrapper.  Keep the default
    (f32) on v5e.
    """
    if compute_dtype is not None:
        # Only the small persistent weights (~10 KB) — amortizes across calls.
        w1 = w1.astype(compute_dtype)
        w2 = w2.astype(compute_dtype)

    # Defensive bias shapes: (N,) -> (1, N).
    b1 = jnp.reshape(b1, (1, -1)).astype(jnp.float32)
    b2 = jnp.reshape(b2, (1, -1)).astype(jnp.float32)

    batch, in_dim = x.shape
    hidden = w1.shape[1]
    out_dim = w2.shape[1]

    tile = _choose_tile_b(batch, tile_b)
    grid = (pl.cdiv(batch, tile),)            # ragged last tile masked by Pallas

    return pl.pallas_call(
        bank_nodes_kernel,
        out_shape=jax.ShapeDtypeStruct((batch, out_dim), jnp.float32),
        grid=grid,
        in_specs=[
            pl.BlockSpec((tile, in_dim), lambda i: (i, 0)),
            pl.BlockSpec((in_dim, hidden), lambda i: (0, 0)),
            pl.BlockSpec((1, hidden), lambda i: (0, 0)),
            pl.BlockSpec((hidden, out_dim), lambda i: (0, 0)),
            pl.BlockSpec((1, out_dim), lambda i: (0, 0)),
        ],
        out_specs=pl.BlockSpec((tile, out_dim), lambda i: (i, 0)),
        compiler_params=pltpu.CompilerParams(
            dimension_semantics=("parallel",)),
    )(x, w1, b1, w2, b2)


def bank_nodes_forward(x, w1, b1, w2, b2, compute_dtype=None):
    """Single-shot path.  For a truly tiny standalone call, plain jnp fused by
    XLA is cheaper than any pallas_call dispatch; this simply routes through
    the batched kernel (single grid step, full-batch block)."""
    return bank_nodes_forward_batched(x, w1, b1, w2, b2,
                                      tile_b=512, compute_dtype=compute_dtype)


def init_params(key, input_size, hidden_size, output_size):
    # Deterministic synthetic init (mimics nn.Linear uniform init shapes, not values).
    k1, k2, k3, k4 = jax.random.split(key, 4)
    bound1 = 1.0 / jnp.sqrt(input_size)
    bound2 = 1.0 / jnp.sqrt(hidden_size)
    w1 = jax.random.uniform(k1, (input_size, hidden_size), jnp.float32, -bound1, bound1)
    b1 = jax.random.uniform(k2, (hidden_size,), jnp.float32, -bound1, bound1)
    w2 = jax.random.uniform(k3, (hidden_size, output_size), jnp.float32, -bound2, bound2)
    b2 = jax.random.uniform(k4, (output_size,), jnp.float32, -bound2, bound2)
    return w1, b1, w2, b2


def _reference(x, w1, b1, w2, b2):
    h = jnp.maximum(x @ w1 + jnp.reshape(b1, (1, -1)), 0.0)
    y = h @ w2 + jnp.reshape(b2, (1, -1))
    return jnp.clip(y * (1.0 / 6.0) + 0.5, 0.0, 1.0)


if __name__ == "__main__":
    config = {"input_size": 32, "hiddenlayer_size": 64, "outputlayer_size": 8}

    key = jax.random.PRNGKey(0)
    kx, kp, kb = jax.random.split(key, 3)
    w1, b1, w2, b2 = init_params(
        kp, config["input_size"], config["hiddenlayer_size"], config["outputlayer_size"]
    )

    # --- Tiny single-shot path (single grid step, full-batch block) ---
    x_small = jax.random.normal(kx, (8, config["input_size"]), jnp.float32)
    out_small = jax.block_until_ready(bank_nodes_forward(x_small, w1, b1, w2, b2))
    ref_small = _reference(x_small, w1, b1, w2, b2)
    assert out_small.shape == (8, config["outputlayer_size"])
    assert jnp.allclose(out_small, ref_small, atol=1e-5, rtol=1e-5)

    # --- Batched path: ragged batch (not a multiple of the tile), 2 parallel
    #     grid steps, no wrapper padding/slicing, exact-size output. ---
    x_big = jax.random.normal(kb, (200, config["input_size"]), jnp.float32)
    out_big = jax.block_until_ready(
        bank_nodes_forward_batched(x_big, w1, b1, w2, b2, tile_b=512)
    )
    ref_big = _reference(x_big, w1, b1, w2, b2)
    assert out_big.shape == (200, config["outputlayer_size"])
    assert jnp.allclose(out_big, ref_big, atol=1e-5, rtol=1e-5)

    print("KERNEL_OK")
</pallas_src>

<mosaic_0001>
module attributes {stable_mosaic.version = 11 : i64} {
  func.func @bank_nodes_kernel(%arg0: i32, %arg1: memref<8x32xf32, #tpu.memory_space<vmem>>, %arg2: memref<32x64xf32, #tpu.memory_space<vmem>>, %arg3: memref<1x64xf32, #tpu.memory_space<vmem>>, %arg4: memref<64x8xf32, #tpu.memory_space<vmem>>, %arg5: memref<1x8xf32, #tpu.memory_space<vmem>>, %arg6: memref<8x8xf32, #tpu.memory_space<vmem>>) attributes {dimension_semantics = [#tpu.dimension_semantics<parallel>], iteration_bounds = array<i64: 1>, scalar_prefetch = 0 : i64, scratch_operands = 0 : i64, tpu.core_type = #tpu.core_type<tc>, window_params = [{transform_indices = @transform_0, window_bounds = array<i64: 8, 32>}, {pipeline_mode = #tpu.pipeline_mode<synchronous>, transform_indices = @transform_1, window_bounds = array<i64: 32, 64>}, {pipeline_mode = #tpu.pipeline_mode<synchronous>, transform_indices = @transform_2, window_bounds = array<i64: 1, 64>}, {pipeline_mode = #tpu.pipeline_mode<synchronous>, transform_indices = @transform_3, window_bounds = array<i64: 64, 8>}, {pipeline_mode = #tpu.pipeline_mode<synchronous>, transform_indices = @transform_4, window_bounds = array<i64: 1, 8>}, {transform_indices = @transform_5, window_bounds = array<i64: 8, 8>}]} {
    %c0 = arith.constant 0 : index
    %c0_0 = arith.constant 0 : index
    %0 = vector.load %arg1[%c0, %c0_0] : memref<8x32xf32, #tpu.memory_space<vmem>>, vector<8x32xf32>
    %c0_1 = arith.constant 0 : index
    %c0_2 = arith.constant 0 : index
    %1 = vector.load %arg2[%c0_1, %c0_2] : memref<32x64xf32, #tpu.memory_space<vmem>>, vector<32x64xf32>
    %cst = arith.constant dense<0.000000e+00> : vector<8x64xf32>
    %2 = tpu.matmul %0, %1, %cst {dimension_numbers = #tpu.dot_dimension_numbers<[1], [0], [0], [1], [0, 0, 1, 1], [], []>} : vector<8x32xf32>, vector<32x64xf32>, vector<8x64xf32> -> vector<8x64xf32>
    %c0_3 = arith.constant 0 : index
    %c0_4 = arith.constant 0 : index
    %3 = vector.load %arg3[%c0_3, %c0_4] : memref<1x64xf32, #tpu.memory_space<vmem>>, vector<1x64xf32>
    %4 = vector.broadcast %3 : vector<1x64xf32> to vector<8x64xf32>
    %5 = arith.addf %2, %4 : vector<8x64xf32>
    %cst_5 = arith.constant 0.000000e+00 : f32
    %6 = vector.broadcast %cst_5 : f32 to vector<8x64xf32>
    %7 = arith.maximumf %5, %6 : vector<8x64xf32>
    %c0_6 = arith.constant 0 : index
    %c0_7 = arith.constant 0 : index
    %8 = vector.load %arg4[%c0_6, %c0_7] : memref<64x8xf32, #tpu.memory_space<vmem>>, vector<64x8xf32>
    %cst_8 = arith.constant dense<0.000000e+00> : vector<8x8xf32>
    %9 = tpu.matmul %7, %8, %cst_8 {dimension_numbers = #tpu.dot_dimension_numbers<[1], [0], [0], [1], [0, 0, 1, 1], [], []>} : vector<8x64xf32>, vector<64x8xf32>, vector<8x8xf32> -> vector<8x8xf32>
    %c0_9 = arith.constant 0 : index
    %c0_10 = arith.constant 0 : index
    %10 = vector.load %arg5[%c0_9, %c0_10] : memref<1x8xf32, #tpu.memory_space<vmem>>, vector<1x8xf32>
    %11 = vector.broadcast %10 : vector<1x8xf32> to vector<8x8xf32>
    %12 = arith.addf %9, %11 : vector<8x8xf32>
    %cst_11 = arith.constant 0.166666672 : f32
    %13 = vector.broadcast %cst_11 : f32 to vector<8x8xf32>
    %14 = arith.mulf %12, %13 : vector<8x8xf32>
    %cst_12 = arith.constant 5.000000e-01 : f32
    %15 = vector.broadcast %cst_12 : f32 to vector<8x8xf32>
    %16 = arith.addf %14, %15 : vector<8x8xf32>
    %cst_13 = arith.constant 0.000000e+00 : f32
    %cst_14 = arith.constant 1.000000e+00 : f32
    %17 = vector.broadcast %cst_13 : f32 to vector<8x8xf32>
    %18 = arith.maximumf %17, %16 : vector<8x8xf32>
    %19 = vector.broadcast %cst_14 : f32 to vector<8x8xf32>
    %20 = arith.minimumf %19, %18 : vector<8x8xf32>
    %c0_15 = arith.constant 0 : index
    %c0_16 = arith.constant 0 : index
    %21 = vector.load %arg6[%c0_15, %c0_16] : memref<8x8xf32, #tpu.memory_space<vmem>>, vector<8x8xf32>
    tpu.vector_store %arg6[%c0_15, %c0_16], %20 {strides = array<i32>} : memref<8x8xf32, #tpu.memory_space<vmem>>, vector<8x8xf32>,
    return
  }
  func.func @transform_0(%arg0: i32) -> (i32, i32) {
    %c0_i32 = arith.constant 0 : i32
    %c0_i32_0 = arith.constant 0 : i32
    return %arg0, %c0_i32 : i32, i32
  }
  func.func @transform_1(%arg0: i32) -> (i32, i32) {
    %c0_i32 = arith.constant 0 : i32
    %c0_i32_0 = arith.constant 0 : i32
    %c0_i32_1 = arith.constant 0 : i32
    return %c0_i32, %c0_i32_0 : i32, i32
  }
  func.func @transform_2(%arg0: i32) -> (i32, i32) {
    %c0_i32 = arith.constant 0 : i32
    %c0_i32_0 = arith.constant 0 : i32
    %c0_i32_1 = arith.constant 0 : i32
    return %c0_i32, %c0_i32_0 : i32, i32
  }
  func.func @transform_3(%arg0: i32) -> (i32, i32) {
    %c0_i32 = arith.constant 0 : i32
    %c0_i32_0 = arith.constant 0 : i32
    %c0_i32_1 = arith.constant 0 : i32
    return %c0_i32, %c0_i32_0 : i32, i32
  }
  func.func @transform_4(%arg0: i32) -> (i32, i32) {
    %c0_i32 = arith.constant 0 : i32
    %c0_i32_0 = arith.constant 0 : i32
    %c0_i32_1 = arith.constant 0 : i32
    return %c0_i32, %c0_i32_0 : i32, i32
  }
  func.func @transform_5(%arg0: i32) -> (i32, i32) {
    %c0_i32 = arith.constant 0 : i32
    %c0_i32_0 = arith.constant 0 : i32
    return %arg0, %c0_i32 : i32, i32
  }
}

</mosaic_0001>

<llo_original>
// kernel: tpu_custom_call.1
$region0: #{tpu_custom_call.1}
  #allocation0 [shape = 'u32[]', space=smem, size = 0x4, offset = 0x4, fixed_abs, tag = 'smem constant byte address 0x4 - core index']
  #allocation1 [shape = 'u32[72,128]{1,0:T(1,128)}', space=vmem, size = 0x9000, scoped, tag = 'internal scratch']
  %s0 = inlined_call_operand.vmem [shape: f32[8,32], index: 0, kind: input, shape index: {}]
  %s1 = inlined_call_operand.vmem [shape: f32[32,64], index: 1, kind: input, shape index: {}]
  %s2 = inlined_call_operand.vmem [shape: f32[1,64], index: 2, kind: input, shape index: {}]
  %s3 = inlined_call_operand.vmem [shape: f32[64,8], index: 3, kind: input, shape index: {}]
  %s4 = inlined_call_operand.vmem [shape: f32[1,8], index: 4, kind: input, shape index: {}]
  %s5 = inlined_call_operand.hbm [shape: f32[8,8], index: 5, kind: output, shape index: {}]
  %s6 = sld [smem:[#allocation0]]
  $region30: #{tpu_custom_call.1} parent=0
    _
  %s8 = ssub.s32 1, %s6
  %s9 = scalar_select 0, %s8, %s6
  $region1: #{tpu_custom_call.1} parent=0
    #allocation2 [shape = 'u8[4096]{0}', space=vmem, size = 0x1000, scoped, tag = 'output window, operand 0, single buffered']
    #allocation3 [shape = 's32[1]{0}', space=sflag, size = 0x4, scoped, tag = 'scoped memory for tpu_custom_call.1']
    %10 = vsyncpa [#allocation3], 0
    // Predicated region
    $region2: #{tpu_custom_call.1} parent=1 // pred_check
      _
    $region3: #{tpu_custom_call.1} parent=1 // pred_check_branch
      %12 = sbr.rel (0) target = $region5
    $region4: #{tpu_custom_call.1} parent=1 // pred_region
      _
    $region5: #{tpu_custom_call.1} parent=1 // pred_fallthru
      _
    // Predicated region
    $region6: #{tpu_custom_call.1} parent=1 // pred_check
      _
    $region7: #{tpu_custom_call.1} parent=1 // pred_check_branch
      %14 = sbr.rel (0) target = $region9
    $region8: #{tpu_custom_call.1} parent=1 // pred_region
      _
    $region9: #{tpu_custom_call.1} parent=1 // pred_fallthru
      _
    // Predicated region
    $region10: #{tpu_custom_call.1} parent=1 // pred_check
      _
    $region11: #{tpu_custom_call.1} parent=1 // pred_check_branch
      %16 = sbr.rel (0) target = $region13
    $region12: #{tpu_custom_call.1} parent=1 // pred_region
      _
    $region13: #{tpu_custom_call.1} parent=1 // pred_fallthru
      _
    // Predicated region
    $region14: #{tpu_custom_call.1} parent=1 // pred_check
      _
    $region15: #{tpu_custom_call.1} parent=1 // pred_check_branch
      %18 = sbr.rel (0) target = $region17
    $region16: #{tpu_custom_call.1} parent=1 // pred_region
      _
    $region17: #{tpu_custom_call.1} parent=1 // pred_fallthru
      _
    // Predicated region
    $region18: #{tpu_custom_call.1} parent=1 // pred_check
      _
    $region19: #{tpu_custom_call.1} parent=1 // pred_check_branch
      %20 = sbr.rel (0) target = $region21
    $region20: #{tpu_custom_call.1} parent=1 // pred_region
      _
    $region21: #{tpu_custom_call.1} parent=1 // pred_fallthru
      _
    %v21 = vld [vmem:[%s0] sm:$0xff]
    %v22 = vld [vmem:[%s1] sm:$0xff]
    %v23 = vld [vmem:[%s1 + $0x8] sm:$0xff]
    %v24 = vld [vmem:[%s1 + $0x10] sm:$0xff]
    %v25 = vld [vmem:[%s1 + $0x18] sm:$0xff]
    %v26 = vld [vmem:[%s2] sm:$0x1]
    %v28 = vperm.slane %v26, 0
    %vm30 = vcmask 261120
    %v32 = vsel %vm30, %v21, 0
    %34 = vmatpush.msra.mxu0 0.0
    %35 = vmatpush.msra.mxu0 0.0
    %36 = vmatpush.msra.mxu0 0.0
    %37 = vmatpush.msra.mxu0 0.0
    %38 = vmatpush.msra.mxu0 0.0
    %39 = vmatpush.msra.mxu0 0.0
    %40 = vmatpush.msra.mxu0 0.0
    %41 = vmatpush.msra.mxu0 0.0
    %42 = vmatpush.msra.mxu0 0.0
    %43 = vmatpush.msra.mxu0 0.0
    %44 = vmatpush.msra.mxu0 0.0
    %45 = vmatpush.msra.mxu0 0.0
    %46 = vmatpush.msra.mxu0 %v25
    %47 = vmatpush.msra.mxu0 %v24
    %48 = vmatpush.msra.mxu0 %v23
    %49 = vmatpush.msra.mxu0 %v22
    %50 = vmatmul.f32.gmra.mxu0 %v32
    %v51 = vpop.f32.mrf.mxu0
    %v52 = vadd.f32 %v28, %v51
    %53 = vdwg.mxu0
    %v54 = vmax.f32 %v52, 0.0
    %v55 = vld [vmem:[%s3] sm:$0xff]
    %v56 = vld [vmem:[%s3 + $0x8] sm:$0xff]
    %v57 = vld [vmem:[%s3 + $0x10] sm:$0xff]
    %v58 = vld [vmem:[%s3 + $0x18] sm:$0xff]
    %v59 = vld [vmem:[%s3 + $0x20] sm:$0xff]
    %v60 = vld [vmem:[%s3 + $0x28] sm:$0xff]
    %v61 = vld [vmem:[%s3 + $0x30] sm:$0xff]
    %v62 = vld [vmem:[%s3 + $0x38] sm:$0xff]
    %v63 = vld [vmem:[%s4] sm:$0x1]
    %v65 = vperm.slane %v63, 0
    %vm67 = vcmask 523264
    %v69 = vsel %vm67, %v54, 0
    %71 = vmatpush.msra.mxu0 0.0
    %72 = vmatpush.msra.mxu0 0.0
    %73 = vmatpush.msra.mxu0 0.0
    %74 = vmatpush.msra.mxu0 0.0
    %75 = vmatpush.msra.mxu0 0.0
    %76 = vmatpush.msra.mxu0 0.0
    %77 = vmatpush.msra.mxu0 0.0
    %78 = vmatpush.msra.mxu0 0.0
    %79 = vmatpush.msra.mxu0 %v62
    %80 = vmatpush.msra.mxu0 %v61
    %81 = vmatpush.msra.mxu0 %v60
    %82 = vmatpush.msra.mxu0 %v59
    %83 = vmatpush.msra.mxu0 %v58
    %84 = vmatpush.msra.mxu0 %v57
    %85 = vmatpush.msra.mxu0 %v56
    %86 = vmatpush.msra.mxu0 %v55
    %87 = vmatmul.f32.gmra.mxu0 %v69
    %v88 = vpop.f32.mrf.mxu0
    %v89 = vadd.f32 %v65, %v88
    %90 = vdwg.mxu0
    %v91 = vmul.f32 %v89, 0.16666667
    %v92 = vadd.f32 %v91, 0.5
    %v93 = vmax.f32 %v92, 0.0
    %v94 = vmin.f32 %v93, 1.0
    %vm95 = vcmask 64512
    %96 = vst.msk [vmem:[#allocation2] sm:$0xff] %vm95, %v94
    // Predicated region
    $region22: #{tpu_custom_call.1} parent=1 // pred_check
      _
    $region23: #{tpu_custom_call.1} parent=1 // pred_check_branch
      %98 = sbr.rel (0) target = $region25
    $region24: #{tpu_custom_call.1} parent=1 // pred_region
      %100 = vsyncadd [#allocation3], 0
      %s102 = sshll.u32 [#allocation2], 4
      %s103 = int_to_ptr.vmem [resolvable:$true] %s102
      %s104 = sshll.u32 %s5, 4
      %s105 = int_to_ptr.hbm [resolvable:$true] %s104
      %107 = dma.vmem_to_hbm [thread:$0]  %s103, 128, %s105, [#allocation3]
    $region25: #{tpu_custom_call.1} parent=1 // pred_fallthru
      _
    // Predicated region
    $region26: #{tpu_custom_call.1} parent=1 // pred_check
      _
    $region27: #{tpu_custom_call.1} parent=1 // pred_check_branch
      %109 = sbr.rel (0) target = $region29
    $region28: #{tpu_custom_call.1} parent=1 // pred_region
      %111 = dma.done [#allocation3], 128
    $region29: #{tpu_custom_call.1} parent=1 // pred_fallthru
      _
    %112 = vsyncpa [#allocation3], 1

</llo_original>
